<compile_context>
chip_gen: v7x
topology: tpu7x:2x2x1
jax: 0.10.0
libtpu: 0.0.40
codegen_flags: <defaults>
</compile_context>

<pallas_src>
import functools

import jax
import jax.numpy as jnp
from jax.experimental import pallas as pl
from jax.experimental.pallas import tpu as pltpu


def _infonce_kernel(za_ref, zb_ref, out_ref, m_ref, l_ref, pos_ref, *,
                    inv_temperature: float, normalize: bool, mxu_dtype):
    qi = pl.program_id(0)
    ki = pl.program_id(1)

    # Init running logsumexp stats / positive logit at the first key tile.
    @pl.when(ki == 0)
    def _():
        m_ref[...] = jnp.full_like(m_ref, -jnp.inf)
        l_ref[...] = jnp.zeros_like(l_ref)
        pos_ref[...] = jnp.zeros_like(pos_ref)

    za = za_ref[...].astype(jnp.float32)            # (TQ, D)
    zb = zb_ref[...].astype(jnp.float32)            # (TK, D)

    if normalize:
        # torch F.normalize(p=2, dim=1, eps=1e-12): x / max(||x||, eps)
        #   == x * rsqrt(max(||x||^2, eps^2))    (rsqrt -> EUP, mul -> VPU)
        za_sq = jnp.sum(za * za, axis=1, keepdims=True)
        zb_sq = jnp.sum(zb * zb, axis=1, keepdims=True)
        za = za * (jax.lax.rsqrt(jnp.maximum(za_sq, 1e-24)) * inv_temperature)
        zb = zb * jax.lax.rsqrt(jnp.maximum(zb_sq, 1e-24))
    else:
        za = za * inv_temperature

    # Positive logit: row-wise dot on the diagonal tile (global diag when qi == ki).
    @pl.when(ki == qi)
    def _():
        pos_ref[...] = jnp.sum(za * zb, axis=1, keepdims=True)

    # Logits tile on the MXU: contract over D for both operands, f32 accumulation.
    s = jax.lax.dot_general(
        za.astype(mxu_dtype), zb.astype(mxu_dtype),
        dimension_numbers=(((1,), (1,)), ((), ())),
        preferred_element_type=jnp.float32)          # (TQ, TK)

    # Online logsumexp update.
    m_prev = m_ref[...]
    m_new = jnp.maximum(m_prev, jnp.max(s, axis=1, keepdims=True))
    alpha = jnp.exp(m_prev - m_new)
    l_ref[...] = alpha * l_ref[...] + jnp.sum(jnp.exp(s - m_new), axis=1, keepdims=True)
    m_ref[...] = m_new

    # Finalize per-row loss once per query tile.
    @pl.when(ki == pl.num_programs(1) - 1)
    def _():
        out_ref[...] = m_ref[...] + jnp.log(l_ref[...]) - pos_ref[...]


def infonce_loss(z_a, z_b, temperature: float = 0.2, normalize: bool = True,
                 block_size: int | None = None, mxu_dtype=jnp.bfloat16):
    assert z_a.shape == z_b.shape and z_a.ndim == 2
    n, d = z_a.shape

    if block_size is None:
        # Prefer 256-aligned tiles for the MXU (v6e/v7x), fall back to 128 (v5e MXU),
        # else a single full-array tile for small/odd N.
        for cand in (512, 256, 128):
            if n % cand == 0:
                block_size = cand
                break
        else:
            block_size = n
    assert n % block_size == 0, "block_size must divide N"
    t = block_size
    grid = (n // t, n // t)

    kernel = functools.partial(
        _infonce_kernel,
        inv_temperature=1.0 / temperature,
        normalize=normalize,
        mxu_dtype=mxu_dtype,
    )

    itemsize = jnp.dtype(z_a.dtype).itemsize
    cost = pl.CostEstimate(
        flops=2 * n * n * d + 8 * n * d,
        transcendentals=n * n + 2 * n,
        bytes_accessed=2 * n * d * itemsize + n * 4,
    )

    per_row = pl.pallas_call(
        kernel,
        out_shape=jax.ShapeDtypeStruct((n, 1), jnp.float32),
        grid_spec=pltpu.PrefetchScalarGridSpec(
            num_scalar_prefetch=0,
            grid=grid,
            in_specs=[
                pl.BlockSpec((t, d), lambda qi, ki: (qi, 0)),   # query rows
                pl.BlockSpec((t, d), lambda qi, ki: (ki, 0)),   # key rows
            ],
            out_specs=pl.BlockSpec((t, 1), lambda qi, ki: (qi, 0)),
            scratch_shapes=[
                pltpu.VMEM((t, 1), jnp.float32),   # running max m
                pltpu.VMEM((t, 1), jnp.float32),   # running sum l
                pltpu.VMEM((t, 1), jnp.float32),   # positive logit
            ],
        ),
        compiler_params=pltpu.CompilerParams(
            dimension_semantics=("parallel", "arbitrary"),
            vmem_limit_bytes=48 * 1024 * 1024,   # safe on v5e/v6e (128 MiB) and v7x (64 MiB)
        ),
        cost_estimate=cost,
    )(z_a, z_b)

    # Tiny final reduction over N scalars done outside the kernel.
    return jnp.mean(per_row[:, 0])


def _reference(z_a, z_b, temperature=0.2, normalize=True):
    za = z_a.astype(jnp.float32)
    zb = z_b.astype(jnp.float32)
    if normalize:
        za = za / jnp.maximum(jnp.linalg.norm(za, axis=1, keepdims=True), 1e-12)
        zb = zb / jnp.maximum(jnp.linalg.norm(zb, axis=1, keepdims=True), 1e-12)
    dot = za @ zb.T / temperature
    pos = jnp.diag(dot)
    lse = jax.scipy.special.logsumexp(dot, axis=1)
    return jnp.mean(lse - pos)


if __name__ == "__main__":
    key = jax.random.PRNGKey(0)
    k_a, k_b, k_c, k_d = jax.random.split(key, 4)

    # Small, module-consistent shapes: Z_a, Z_b are (N, D) embeddings.
    N, D = 8, 32
    Z_a = jax.random.normal(k_a, (N, D), dtype=jnp.float32)
    Z_b = jax.random.normal(k_b, (N, D), dtype=jnp.float32)

    ref_small = _reference(Z_a, Z_b)

    # Exact (f32 MXU feed) check, single-tile path.
    loss_f32 = jax.block_until_ready(
        infonce_loss(Z_a, Z_b, temperature=0.2, normalize=True, mxu_dtype=jnp.float32))
    assert jnp.allclose(loss_f32, ref_small, atol=1e-4, rtol=1e-4), (loss_f32, ref_small)

    # Default bf16-fed MXU (f32 accumulation): small precision delta expected.
    loss_bf16 = jax.block_until_ready(
        infonce_loss(Z_a, Z_b, temperature=0.2, normalize=True))
    assert jnp.allclose(loss_bf16, ref_small, atol=3e-2, rtol=3e-2), (loss_bf16, ref_small)

    # Exercise the tiled / online-logsumexp path (multi-tile grid).
    N2, D2 = 256, 64
    Za2 = jax.random.normal(k_c, (N2, D2), dtype=jnp.float32)
    Zb2 = jax.random.normal(k_d, (N2, D2), dtype=jnp.float32)
    ref_tiled = _reference(Za2, Zb2)
    loss_tiled = jax.block_until_ready(
        infonce_loss(Za2, Zb2, temperature=0.2, normalize=True,
                     block_size=128, mxu_dtype=jnp.float32))
    assert jnp.allclose(loss_tiled, ref_tiled, atol=1e-4, rtol=1e-4), (loss_tiled, ref_tiled)

    # TODO(synk): multi-device gather()/get_rank() semantics (cross-device negatives) are
    # not implemented; single-device semantics (world_size=1) are assumed.
    print("KERNEL_OK")
</pallas_src>

<mosaic_0001>
module attributes {stable_mosaic.version = 11 : i64} {
  func.func @_infonce_kernel(%arg0: i32, %arg1: i32, %arg2: memref<8x32xf32, #tpu.memory_space<vmem>>, %arg3: memref<8x32xf32, #tpu.memory_space<vmem>>, %arg4: memref<8x1xf32, #tpu.memory_space<vmem>>, %arg5: memref<8x1xf32, #tpu.memory_space<vmem>>, %arg6: memref<8x1xf32, #tpu.memory_space<vmem>>, %arg7: memref<8x1xf32, #tpu.memory_space<vmem>>) attributes {dimension_semantics = [#tpu.dimension_semantics<parallel>, #tpu.dimension_semantics<arbitrary>], iteration_bounds = array<i64: 1, 1>, scalar_prefetch = 0 : i64, scratch_operands = 3 : i64, tpu.core_type = #tpu.core_type<tc>, window_params = [{transform_indices = @transform_0, window_bounds = array<i64: 8, 32>}, {transform_indices = @transform_1, window_bounds = array<i64: 8, 32>}, {transform_indices = @transform_2, window_bounds = array<i64: 8, 1>}]} {
    %c0_i32 = arith.constant 0 : i32
    %0 = arith.cmpi eq, %arg1, %c0_i32 : i32
    %1 = arith.extui %0 : i1 to i32
    %c0_i32_0 = arith.constant 0 : i32
    %2 = arith.cmpi ne, %1, %c0_i32_0 : i32
    scf.if %2 {
      %cst_22 = arith.constant 0xFF800000 : f32
      %46 = vector.broadcast %cst_22 : f32 to vector<8x1xf32>
      %c0_23 = arith.constant 0 : index
      %c0_24 = arith.constant 0 : index
      %47 = vector.load %arg5[%c0_23, %c0_24] : memref<8x1xf32, #tpu.memory_space<vmem>>, vector<8x1xf32>
      tpu.vector_store %arg5[%c0_23, %c0_24], %46 {strides = array<i32>} : memref<8x1xf32, #tpu.memory_space<vmem>>, vector<8x1xf32>,
      %cst_25 = arith.constant 0.000000e+00 : f32
      %48 = vector.broadcast %cst_25 : f32 to vector<8x1xf32>
      %c0_26 = arith.constant 0 : index
      %c0_27 = arith.constant 0 : index
      %49 = vector.load %arg6[%c0_26, %c0_27] : memref<8x1xf32, #tpu.memory_space<vmem>>, vector<8x1xf32>
      tpu.vector_store %arg6[%c0_26, %c0_27], %48 {strides = array<i32>} : memref<8x1xf32, #tpu.memory_space<vmem>>, vector<8x1xf32>,
      %cst_28 = arith.constant 0.000000e+00 : f32
      %50 = vector.broadcast %cst_28 : f32 to vector<8x1xf32>
      %c0_29 = arith.constant 0 : index
      %c0_30 = arith.constant 0 : index
      %51 = vector.load %arg7[%c0_29, %c0_30] : memref<8x1xf32, #tpu.memory_space<vmem>>, vector<8x1xf32>
      tpu.vector_store %arg7[%c0_29, %c0_30], %50 {strides = array<i32>} : memref<8x1xf32, #tpu.memory_space<vmem>>, vector<8x1xf32>,
    } else {
    }
    %c0 = arith.constant 0 : index
    %c0_1 = arith.constant 0 : index
    %3 = vector.load %arg2[%c0, %c0_1] : memref<8x32xf32, #tpu.memory_space<vmem>>, vector<8x32xf32>
    %c0_2 = arith.constant 0 : index
    %c0_3 = arith.constant 0 : index
    %4 = vector.load %arg3[%c0_2, %c0_3] : memref<8x32xf32, #tpu.memory_space<vmem>>, vector<8x32xf32>
    %5 = arith.mulf %3, %3 : vector<8x32xf32>
    %cst = arith.constant dense<0.000000e+00> : vector<8xf32>
    %6 = vector.multi_reduction <add>, %5, %cst [1] : vector<8x32xf32> to vector<8xf32>
    %7 = vector.shape_cast %6 : vector<8xf32> to vector<8x1xf32>
    %8 = arith.mulf %4, %4 : vector<8x32xf32>
    %cst_4 = arith.constant dense<0.000000e+00> : vector<8xf32>
    %9 = vector.multi_reduction <add>, %8, %cst_4 [1] : vector<8x32xf32> to vector<8xf32>
    %10 = vector.shape_cast %9 : vector<8xf32> to vector<8x1xf32>
    %cst_5 = arith.constant 1.000000e-24 : f32
    %11 = vector.broadcast %cst_5 : f32 to vector<8x1xf32>
    %12 = arith.maximumf %7, %11 : vector<8x1xf32>
    %13 = math.rsqrt %12 : vector<8x1xf32>
    %cst_6 = arith.constant 5.000000e+00 : f32
    %14 = vector.broadcast %cst_6 : f32 to vector<8x1xf32>
    %15 = arith.mulf %13, %14 : vector<8x1xf32>
    %16 = vector.broadcast %15 : vector<8x1xf32> to vector<8x32xf32>
    %17 = arith.mulf %3, %16 : vector<8x32xf32>
    %cst_7 = arith.constant 1.000000e-24 : f32
    %18 = vector.broadcast %cst_7 : f32 to vector<8x1xf32>
    %19 = arith.maximumf %10, %18 : vector<8x1xf32>
    %20 = math.rsqrt %19 : vector<8x1xf32>
    %21 = vector.broadcast %20 : vector<8x1xf32> to vector<8x32xf32>
    %22 = arith.mulf %4, %21 : vector<8x32xf32>
    %23 = arith.cmpi eq, %arg1, %arg0 : i32
    %24 = arith.extui %23 : i1 to i32
    %c0_i32_8 = arith.constant 0 : i32
    %25 = arith.cmpi ne, %24, %c0_i32_8 : i32
    scf.if %25 {
      %46 = arith.mulf %17, %22 : vector<8x32xf32>
      %cst_22 = arith.constant dense<0.000000e+00> : vector<8xf32>
      %47 = vector.multi_reduction <add>, %46, %cst_22 [1] : vector<8x32xf32> to vector<8xf32>
      %48 = vector.shape_cast %47 : vector<8xf32> to vector<8x1xf32>
      %c0_23 = arith.constant 0 : index
      %c0_24 = arith.constant 0 : index
      %49 = vector.load %arg7[%c0_23, %c0_24] : memref<8x1xf32, #tpu.memory_space<vmem>>, vector<8x1xf32>
      tpu.vector_store %arg7[%c0_23, %c0_24], %48 {strides = array<i32>} : memref<8x1xf32, #tpu.memory_space<vmem>>, vector<8x1xf32>,
    } else {
    }
    %cst_9 = arith.constant dense<0.000000e+00> : vector<8x8xf32>
    %26 = tpu.matmul %17, %22, %cst_9 {dimension_numbers = #tpu.dot_dimension_numbers<[1], [1], [0], [0], [0, 0, 1, 0], [], []>} : vector<8x32xf32>, vector<8x32xf32>, vector<8x8xf32> -> vector<8x8xf32>
    %c0_10 = arith.constant 0 : index
    %c0_11 = arith.constant 0 : index
    %27 = vector.load %arg5[%c0_10, %c0_11] : memref<8x1xf32, #tpu.memory_space<vmem>>, vector<8x1xf32>
    %cst_12 = arith.constant dense<0xFF800000> : vector<8xf32>
    %28 = vector.multi_reduction <maximumf>, %26, %cst_12 [1] : vector<8x8xf32> to vector<8xf32>
    %29 = vector.shape_cast %28 : vector<8xf32> to vector<8x1xf32>
    %30 = arith.maximumf %27, %29 : vector<8x1xf32>
    %31 = arith.subf %27, %30 : vector<8x1xf32>
    %32 = math.exp %31 : vector<8x1xf32>
    %c0_13 = arith.constant 0 : index
    %c0_14 = arith.constant 0 : index
    %33 = vector.load %arg6[%c0_13, %c0_14] : memref<8x1xf32, #tpu.memory_space<vmem>>, vector<8x1xf32>
    %34 = arith.mulf %32, %33 : vector<8x1xf32>
    %35 = vector.broadcast %30 : vector<8x1xf32> to vector<8x8xf32>
    %36 = arith.subf %26, %35 : vector<8x8xf32>
    %37 = math.exp %36 : vector<8x8xf32>
    %cst_15 = arith.constant dense<0.000000e+00> : vector<8xf32>
    %38 = vector.multi_reduction <add>, %37, %cst_15 [1] : vector<8x8xf32> to vector<8xf32>
    %39 = vector.shape_cast %38 : vector<8xf32> to vector<8x1xf32>
    %40 = arith.addf %34, %39 : vector<8x1xf32>
    %c0_16 = arith.constant 0 : index
    %c0_17 = arith.constant 0 : index
    %41 = vector.load %arg6[%c0_16, %c0_17] : memref<8x1xf32, #tpu.memory_space<vmem>>, vector<8x1xf32>
    tpu.vector_store %arg6[%c0_16, %c0_17], %40 {strides = array<i32>} : memref<8x1xf32, #tpu.memory_space<vmem>>, vector<8x1xf32>,
    %c0_18 = arith.constant 0 : index
    %c0_19 = arith.constant 0 : index
    %42 = vector.load %arg5[%c0_18, %c0_19] : memref<8x1xf32, #tpu.memory_space<vmem>>, vector<8x1xf32>
    tpu.vector_store %arg5[%c0_18, %c0_19], %30 {strides = array<i32>} : memref<8x1xf32, #tpu.memory_space<vmem>>, vector<8x1xf32>,
    %c0_i32_20 = arith.constant 0 : i32
    %43 = arith.cmpi eq, %arg1, %c0_i32_20 : i32
    %44 = arith.extui %43 : i1 to i32
    %c0_i32_21 = arith.constant 0 : i32
    %45 = arith.cmpi ne, %44, %c0_i32_21 : i32
    scf.if %45 {
      %c0_22 = arith.constant 0 : index
      %c0_23 = arith.constant 0 : index
      %46 = vector.load %arg5[%c0_22, %c0_23] : memref<8x1xf32, #tpu.memory_space<vmem>>, vector<8x1xf32>
      %c0_24 = arith.constant 0 : index
      %c0_25 = arith.constant 0 : index
      %47 = vector.load %arg6[%c0_24, %c0_25] : memref<8x1xf32, #tpu.memory_space<vmem>>, vector<8x1xf32>
      %48 = math.log %47 : vector<8x1xf32>
      %49 = arith.addf %46, %48 : vector<8x1xf32>
      %c0_26 = arith.constant 0 : index
      %c0_27 = arith.constant 0 : index
      %50 = vector.load %arg7[%c0_26, %c0_27] : memref<8x1xf32, #tpu.memory_space<vmem>>, vector<8x1xf32>
      %51 = arith.subf %49, %50 : vector<8x1xf32>
      %c0_28 = arith.constant 0 : index
      %c0_29 = arith.constant 0 : index
      %52 = vector.load %arg4[%c0_28, %c0_29] : memref<8x1xf32, #tpu.memory_space<vmem>>, vector<8x1xf32>
      tpu.vector_store %arg4[%c0_28, %c0_29], %51 {strides = array<i32>} : memref<8x1xf32, #tpu.memory_space<vmem>>, vector<8x1xf32>,
    } else {
    }
    return
  }
  func.func @transform_0(%arg0: i32, %arg1: i32) -> (i32, i32) {
    %c0_i32 = arith.constant 0 : i32
    %c0_i32_0 = arith.constant 0 : i32
    return %arg0, %c0_i32 : i32, i32
  }
  func.func @transform_1(%arg0: i32, %arg1: i32) -> (i32, i32) {
    %c0_i32 = arith.constant 0 : i32
    %c0_i32_0 = arith.constant 0 : i32
    return %arg1, %c0_i32 : i32, i32
  }
  func.func @transform_2(%arg0: i32, %arg1: i32) -> (i32, i32) {
    %c0_i32 = arith.constant 0 : i32
    %c0_i32_0 = arith.constant 0 : i32
    return %arg0, %c0_i32 : i32, i32
  }
}

</mosaic_0001>

<llo_original>
// kernel: tpu_custom_call.1
$region0: #{tpu_custom_call.1}
  #allocation0 [shape = 'u32[]', space=smem, size = 0x4, offset = 0x4, fixed_abs, tag = 'smem constant byte address 0x4 - core index']
  #allocation1 [shape = 'u32[144,128]{1,0:T(1,128)}', space=vmem, size = 0x12000, scoped, tag = 'internal scratch']
  #allocation2 [shape = 'f32[8,1]{1,0:T(8,128)}', space=vmem, size = 0x1000, scoped, tag = 'scratch operand']
  #allocation3 [shape = 'f32[8,1]{1,0:T(8,128)}', space=vmem, size = 0x1000, scoped, tag = 'scratch operand']
  #allocation4 [shape = 'f32[8,1]{1,0:T(8,128)}', space=vmem, size = 0x1000, scoped, tag = 'scratch operand']
  %s0 = inlined_call_operand.hbm [shape: f32[8,32], index: 0, kind: input, shape index: {}]
  %s1 = inlined_call_operand.hbm [shape: f32[8,32], index: 1, kind: input, shape index: {}]
  %s2 = inlined_call_operand.vmem [shape: f32[8,1], index: 2, kind: output, shape index: {}]
  %s3 = sld [smem:[#allocation0]]
  $region38: #{tpu_custom_call.1} parent=0
    _
  %s5 = ssub.s32 1, %s3
  %s6 = scalar_select 0, %s5, %s3
  $region1: #{tpu_custom_call.1} parent=0
    #allocation5 [shape = 'u8[4096]{0}', space=vmem, size = 0x1000, scoped, tag = 'input window, operand 0, single buffered']
    #allocation6 [shape = 's32[1]{0}', space=sflag, size = 0x4, scoped, tag = 'scoped memory for tpu_custom_call.1']
    #allocation7 [shape = 'u8[4096]{0}', space=vmem, size = 0x1000, scoped, tag = 'input window, operand 1, single buffered']
    #allocation8 [shape = 's32[1]{0}', space=sflag, size = 0x4, scoped, tag = 'scoped memory for tpu_custom_call.1']
    %7 = vsyncpa [#allocation6], 0
    %8 = vsyncpa [#allocation8], 0
    // Predicated region
    $region2: #{tpu_custom_call.1} parent=1 // pred_check
      _
    $region3: #{tpu_custom_call.1} parent=1 // pred_check_branch
      %10 = sbr.rel (0) target = $region5
    $region4: #{tpu_custom_call.1} parent=1 // pred_region
      %s12 = ssub.s32 128, 128
      %13 = vsyncadd [#allocation6], %s12
      %s15 = sshll.u32 [#allocation5], 4
      %s16 = int_to_ptr.vmem [resolvable:$true] %s15
      %18 = dma.hbm_to_vmem [thread:$0]  %s0, 128, %s16, [#allocation6]
    $region5: #{tpu_custom_call.1} parent=1 // pred_fallthru
      _
    // Predicated region
    $region6: #{tpu_custom_call.1} parent=1 // pred_check
      _
    $region7: #{tpu_custom_call.1} parent=1 // pred_check_branch
      %20 = sbr.rel (0) target = $region9
    $region8: #{tpu_custom_call.1} parent=1 // pred_region
      %s22 = ssub.s32 128, 128
      %23 = vsyncadd [#allocation8], %s22
      %s25 = sshll.u32 [#allocation7], 4
      %s26 = int_to_ptr.vmem [resolvable:$true] %s25
      %28 = dma.hbm_to_vmem [thread:$0]  %s1, 128, %s26, [#allocation8]
    $region9: #{tpu_custom_call.1} parent=1 // pred_fallthru
      _
    // Predicated region
    $region10: #{tpu_custom_call.1} parent=1 // pred_check
      _
    $region11: #{tpu_custom_call.1} parent=1 // pred_check_branch
      %30 = sbr.rel (0) target = $region13
    $region12: #{tpu_custom_call.1} parent=1 // pred_region
      %31 = dma.done [#allocation6], 128
    $region13: #{tpu_custom_call.1} parent=1 // pred_fallthru
      _
    // Predicated region
    $region14: #{tpu_custom_call.1} parent=1 // pred_check
      _
    $region15: #{tpu_custom_call.1} parent=1 // pred_check_branch
      %33 = sbr.rel (0) target = $region17
    $region16: #{tpu_custom_call.1} parent=1 // pred_region
      %34 = dma.done [#allocation8], 128
    $region17: #{tpu_custom_call.1} parent=1 // pred_fallthru
      _
    %p35 = scmp.eq.s32.totalorder 0, 0
    // Predicated region
    $region18: #{tpu_custom_call.1} parent=1 // pred_check
      %p36 = pneg %p35
    $region19: #{tpu_custom_call.1} parent=1 // pred_check_branch
      %38 = sbr.rel (%p36) target = $region21
    $region20: #{tpu_custom_call.1} parent=1 // pred_region
      %vm39 = vcmask 7168
      %40 = vst.msk [vmem:[#allocation2] sm:$0xff] %vm39, -inf
      %41 = vst.msk [vmem:[#allocation3] sm:$0xff] %vm39, 0.0
      %42 = vst.msk [vmem:[#allocation4] sm:$0xff] %vm39, 0.0
    $region21: #{tpu_custom_call.1} parent=1 // pred_fallthru
      _
    %v43 = vld [vmem:[#allocation5] sm:$0xff]
    %v44 = vld [vmem:[#allocation7] sm:$0xff]
    %v45 = vmul.f32 %v43, %v43
    %vm46 = vcmask 261120
    %v47 = vsel %vm46, %v45, 0.0
    %48 = vadd.xlane.f32.xlu0 %v47
    %v49 = vpop.xlane.xlu0 %48
    %v50 = vmul.f32 %v44, %v44
    %v51 = vsel %vm46, %v50, 0.0
    %52 = vadd.xlane.f32.xlu0 %v51
    %v53 = vpop.xlane.xlu0 %52
    %v54 = vmax.f32 %v49, 1e-24
    %v55 = vrsqrt.pop %v54
    %v56 = vmul.f32 %v55, 5.0
    %v57 = vmul.f32 %v43, %v56
    %v58 = vmax.f32 %v53, 1e-24
    %v59 = vrsqrt.pop %v58
    %v60 = vmul.f32 %v44, %v59
    %p61 = scmp.eq.s32.totalorder 0, 0
    // Predicated region
    $region22: #{tpu_custom_call.1} parent=1 // pred_check
      %p62 = pneg %p61
    $region23: #{tpu_custom_call.1} parent=1 // pred_check_branch
      %64 = sbr.rel (%p62) target = $region25
    $region24: #{tpu_custom_call.1} parent=1 // pred_region
      %v65 = vmul.f32 %v57, %v60
      %v66 = vsel %vm46, %v65, 0.0
      %67 = vadd.xlane.f32.xlu0 %v66
      %v68 = vpop.xlane.xlu0 %67
      %vm69 = vcmask 7168
      %70 = vst.msk [vmem:[#allocation4] sm:$0xff] %vm69, %v68
    $region25: #{tpu_custom_call.1} parent=1 // pred_fallthru
      _
    %v72 = vsel %vm46, %v57, 0
    %v75 = vsel %vm46, %v60, 0
    %77 = vmatprep.subr.mxu0 0.0
    %78 = vmatpush1.xpose.msra.mxu0 %v75
    %79 = vmatprep.subr.mxu0 0.0
    %80 = vmatpush1.xpose.msra.mxu0 0.0
    %81 = vmatprep.subr.mxu0 0.0
    %82 = vmatpush1.xpose.msra.mxu0 0.0
    %83 = vmatprep.subr.mxu0 0.0
    %84 = vmatpush1.xpose.msra.mxu0 0.0
    %85 = vmatprep.subr.mxu0 0.0
    %86 = vmatpush1.xpose.msra.mxu0 0.0
    %87 = vmatprep.subr.mxu0 0.0
    %88 = vmatpush1.xpose.msra.mxu0 0.0
    %89 = vmatprep.subr.mxu0 0.0
    %90 = vmatpush1.xpose.msra.mxu0 0.0
    %91 = vmatprep.subr.mxu0 0.0
    %92 = vmatpush1.xpose.msra.mxu0 0.0
    %93 = vmatprep.subr.mxu0 0.0
    %94 = vmatpush1.xpose.msra.mxu0 0.0
    %95 = vmatprep.subr.mxu0 0.0
    %96 = vmatpush1.xpose.msra.mxu0 0.0
    %97 = vmatprep.subr.mxu0 0.0
    %98 = vmatpush1.xpose.msra.mxu0 0.0
    %99 = vmatprep.subr.mxu0 0.0
    %100 = vmatpush1.xpose.msra.mxu0 0.0
    %101 = vmatprep.subr.mxu0 0.0
    %102 = vmatpush1.xpose.msra.mxu0 0.0
    %103 = vmatprep.subr.mxu0 0.0
    %104 = vmatpush1.xpose.msra.mxu0 0.0
    %105 = vmatprep.subr.mxu0 0.0
    %106 = vmatpush1.xpose.msra.mxu0 0.0
    %107 = vmatprep.subr.mxu0 0.0
    %108 = vmatpush1.xpose.msra.mxu0 0.0
    %109 = vmatprep.subr.mxu0 0.0
    %110 = vmatpush1.xpose.msra.mxu0 0.0
    %111 = vmatprep.subr.mxu0 0.0
    %112 = vmatpush1.xpose.msra.mxu0 0.0
    %113 = vmatprep.subr.mxu0 0.0
    %114 = vmatpush1.xpose.msra.mxu0 0.0
    %115 = vmatprep.subr.mxu0 0.0
    %116 = vmatpush1.xpose.msra.mxu0 0.0
    %117 = vmatprep.subr.mxu0 0.0
    %118 = vmatpush1.xpose.msra.mxu0 0.0
    %119 = vmatprep.subr.mxu0 0.0
    %120 = vmatpush1.xpose.msra.mxu0 0.0
    %121 = vmatprep.subr.mxu0 0.0
    %122 = vmatpush1.xpose.msra.mxu0 0.0
    %123 = vmatprep.subr.mxu0 0.0
    %124 = vmatpush1.xpose.msra.mxu0 0.0
    %125 = vmatprep.subr.mxu0 0.0
    %126 = vmatpush1.xpose.msra.mxu0 0.0
    %127 = vmatprep.subr.mxu0 0.0
    %128 = vmatpush1.xpose.msra.mxu0 0.0
    %129 = vmatprep.subr.mxu0 0.0
    %130 = vmatpush1.xpose.msra.mxu0 0.0
    %131 = vmatprep.subr.mxu0 0.0
    %132 = vmatpush1.xpose.msra.mxu0 0.0
    %133 = vmatprep.subr.mxu0 0.0
    %134 = vmatpush1.xpose.msra.mxu0 0.0
    %135 = vmatprep.subr.mxu0 0.0
    %136 = vmatpush1.xpose.msra.mxu0 0.0
    %137 = vmatprep.subr.mxu0 0.0
    %138 = vmatpush1.xpose.msra.mxu0 0.0
    %139 = vmatprep.subr.mxu0 0.0
    %140 = vmatpush1.xpose.msra.mxu0 0.0
    %141 = vmatprep.mubr.f32.mxu0 0.0
    %142 = vmatmul.mubr.f32.gmra.mrb[0].mxu0 %v72
    %v143 = vpop.f32.mrb[0].mxu0
    %v144 = vadd.f32 0.0, %v143
    %v145 = vpop.f32.mrb[0].mxu0
    %146 = vdwg.mxu0
    %v147 = vld [vmem:[#allocation2] sm:$0xff]
    %vm148 = vcmask 64512
    %v149 = vsel %vm148, %v144, -inf
    %150 = vmax.xlane.f32.xlu0 %v149
    %v151 = vpop.xlane.xlu0 %150
    %v152 = vmax.f32 %v147, %v151
    %v153 = vsub.f32 %v147, %v152
    %v154 = vmul.f32 %v153, 1.442695
    %v155 = vpow.pop %v154
    %v156 = vld [vmem:[#allocation3] sm:$0xff]
    %v157 = vmul.f32 %v155, %v156
    %159 = vset.pattern.permute.xlu0 0
    %160 = vperm.xlu0 %159, %v152
    %v161 = vpop.permute.xlu0 %160
    %v163 = vsub.f32 %v144, %v161
    %v164 = vmul.f32 %v163, 1.442695
    %v165 = vpow.pop %v164
    %v166 = vsel %vm148, %v165, 0.0
    %167 = vadd.xlane.f32.xlu0 %v166
    %v168 = vpop.xlane.xlu0 %167
    %v169 = vadd.f32 %v157, %v168
    %vm170 = vcmask 7168
    %171 = vst.msk [vmem:[#allocation3] sm:$0xff] %vm170, %v169
    %172 = vst.msk [vmem:[#allocation2] sm:$0xff] %vm170, %v152
    // Predicated region
    $region26: #{tpu_custom_call.1} parent=1 // pred_check
      %p173 = pneg %p35
    $region27: #{tpu_custom_call.1} parent=1 // pred_check_branch
      %175 = sbr.rel (%p173) target = $region29
    $region28: #{tpu_custom_call.1} parent=1 // pred_region
      %v176 = vld [vmem:[#allocation2] sm:$0xff]
      %v177 = vld [vmem:[#allocation3] sm:$0xff]
      %v178 = vlog2.pop %v177
      %v179 = vmul.f32 %v178, 0.6931472
      %v180 = vadd.f32 %v176, %v179
      %v181 = vld [vmem:[#allocation4] sm:$0xff]
      %v182 = vsub.f32 %v180, %v181
      %183 = vst.msk [vmem:[%s2] sm:$0xff] %vm170, %v182
    $region29: #{tpu_custom_call.1} parent=1 // pred_fallthru
      _
    // Predicated region
    $region30: #{tpu_custom_call.1} parent=1 // pred_check
      _
    $region31: #{tpu_custom_call.1} parent=1 // pred_check_branch
      %185 = sbr.rel (0) target = $region33
    $region32: #{tpu_custom_call.1} parent=1 // pred_region
      _
    $region33: #{tpu_custom_call.1} parent=1 // pred_fallthru
      _
    // Predicated region
    $region34: #{tpu_custom_call.1} parent=1 // pred_check
      _
    $region35: #{tpu_custom_call.1} parent=1 // pred_check_branch
      %187 = sbr.rel (0) target = $region37
    $region36: #{tpu_custom_call.1} parent=1 // pred_region
      _
    $region37: #{tpu_custom_call.1} parent=1 // pred_fallthru
      _
    %188 = vsyncpa [#allocation6], 1
    %189 = vsyncpa [#allocation8], 1

</llo_original>
